<compile_context>
chip_gen: v7x
topology: tpu7x:2x2x1
jax: 0.10.0
libtpu: 0.0.40
codegen_flags: <defaults>
</compile_context>

<pallas_src>
import jax
import jax.numpy as jnp
from jax.experimental import pallas as pl
from jax.experimental.pallas import tpu as pltpu

DESIRED_AVG = 0.002   # LayerNormAVG desired average
LN_EPS = 1e-6         # LayerNormAVG eps
COS_EPS = 1e-8        # F.cosine_similarity eps


def _make_kernel(d_model: int, has_prev0: bool):
    """Fused per-step body; A (prev_prediction) is carried in a VMEM scratch."""
    d = d_model

    def kernel(idx_ref, sv_ref, src_ref, enc_ref, *rest):
        # rest layout:
        #   has_prev0:  prev0, wbig, cosw, bias, fin, out, score, a_scr
        #   else:       winsrc_w, winsrc_b, wbig, cosw, bias, fin, out, score, a_scr
        del idx_ref  # only consumed by the BlockSpec index_maps
        if has_prev0:
            prev0_ref = rest[0]
            (wbig_ref, cosw_ref, bias_ref, fin_ref,
             out_ref, score_ref, a_scr) = rest[1:]
        else:
            winsrc_w_ref, winsrc_b_ref = rest[0], rest[1]
            (wbig_ref, cosw_ref, bias_ref, fin_ref,
             out_ref, score_ref, a_scr) = rest[2:]

        @pl.when(pl.program_id(0) == 0)
        def _init():
            if has_prev0:
                a_scr[...] = prev0_ref[...]
            else:
                # prev_prediction = LayerNormAVG(tanh(Winsrc(tanh(source_vector))))
                sv = sv_ref[...]
                pp = jnp.tanh(
                    jnp.dot(jnp.tanh(sv), winsrc_w_ref[...],
                            preferred_element_type=jnp.float32)
                    + winsrc_b_ref[...])
                ss = jnp.sum(jnp.sum(pp * pp, axis=-1, keepdims=True),
                             axis=0, keepdims=True)          # (1,1) == torch.sum(x**2)
                to_norm = jnp.sqrt(DESIRED_AVG * d) * jax.lax.rsqrt(ss)
                mean = jnp.mean(pp, axis=-1, keepdims=True)
                # torch.std default is unbiased (N-1 denominator)
                var = jnp.sum((pp - mean) * (pp - mean), axis=-1,
                              keepdims=True) / (d - 1)
                std = jnp.sqrt(var)
                a_scr[...] = to_norm * (pp - mean) / (std + LN_EPS)

        A = a_scr[...]                 # (B, d)    prev_prediction
        sv = sv_ref[...]               # (B, in)   source_vector
        Bv = src_ref[...]              # (B, in)   src[:, i]
        E = enc_ref[...]               # (B, 2*in) enc_memory[i]
        Dv = A - Bv

        def cosine(x, y):              # F.cosine_similarity over the last dim
            w12 = jnp.sum(x * y, axis=-1, keepdims=True)
            w1 = jnp.sum(x * x, axis=-1, keepdims=True)
            w2 = jnp.sum(y * y, axis=-1, keepdims=True)
            return w12 * jax.lax.rsqrt(jnp.maximum(w1 * w2, COS_EPS * COS_EPS))

        c1 = cosine(A, Bv)             # prev_cur_angle   (B, 1)
        c2 = cosine(A, sv)             # prev_total_angle (B, 1)

        # Single fused MXU pass for all four gate matmuls:
        #   columns [0:d]=fg, [d:2d]=ig, [2d:3d]=og, [3d:4d]=ct (tanh input)
        X = jnp.concatenate([E, Bv, A], axis=-1)               # (B, 4*in)
        pre = (jnp.dot(X, wbig_ref[...], preferred_element_type=jnp.float32)
               + bias_ref[...]
               + c1 * cosw_ref[0:1, :] + c2 * cosw_ref[1:2, :])  # (B, 4*d)

        fg = jax.nn.sigmoid(pre[:, 0:d])
        ig = jax.nn.sigmoid(pre[:, d:2 * d])
        og = jax.nn.sigmoid(pre[:, 2 * d:3 * d])
        ct = fg * A + ig * jnp.tanh(pre[:, 3 * d:4 * d])
        ht = og * jax.nn.sigmoid(ct)

        # final Linear(d, 1): VPU multiply + lane reduction instead of N=1 matmul.
        score = jax.nn.sigmoid(
            jnp.sum(ht * fin_ref[0:1, :], axis=-1, keepdims=True)
            + fin_ref[1:2, 0:1])                                # (B, 1)

        out = A - Dv * score
        out_ref[...] = out
        score_ref[...] = score
        a_scr[...] = out               # carry as prev_prediction for the next step

    return kernel


def _vecdiff_pallas(src_t, enc_memory, source_vector, params, idx, prev0=None):
    """Run the fused kernel over grid=(len(idx),); idx[g] is the sequence index
    used at grid step g.  Returns out (n, B, d) and score (n, B, 1)."""
    seq, batch, input_size = src_t.shape
    d_model = params["wbig"].shape[1] // 4
    assert d_model == input_size, "VecdiffDecoder forward requires d_model == input_size"
    n_steps = int(idx.shape[0])
    has_prev0 = prev0 is not None

    kernel = _make_kernel(d_model, has_prev0)

    def const(shape):  # whole-array block, constant index_map -> DMA'd once
        return pl.BlockSpec(shape, lambda g, i, _n=len(shape): (0,) * _n)

    in_specs = [
        const((batch, input_size)),                                            # source_vector
        pl.BlockSpec((None, batch, input_size), lambda g, i: (i[g], 0, 0)),    # src_t slab
        pl.BlockSpec((None, batch, 2 * input_size), lambda g, i: (i[g], 0, 0)),  # enc slab
    ]
    operands = [source_vector, src_t, enc_memory]
    if has_prev0:
        in_specs.append(const((batch, d_model)))
        operands.append(prev0)
    else:
        in_specs += [const((input_size, d_model)), const((1, d_model))]
        operands += [params["winsrc_w"], params["winsrc_b"]]
    in_specs += [
        const((4 * input_size, 4 * d_model)),   # wbig  (fused gate weights)
        const((2, 4 * d_model)),                # cosw  (c1/c2 rank-1 weights)
        const((1, 4 * d_model)),                # bias  (packed gate biases)
        const((2, d_model)),                    # final_pack (row0=w, row1=b)
    ]
    operands += [params["wbig"], params["cosw"], params["bias"], params["final_pack"]]

    out_shape = (jax.ShapeDtypeStruct((n_steps, batch, d_model), jnp.float32),
                 jax.ShapeDtypeStruct((n_steps, batch, 1), jnp.float32))
    out_specs = (pl.BlockSpec((None, batch, d_model), lambda g, i: (g, 0, 0)),
                 pl.BlockSpec((None, batch, 1), lambda g, i: (g, 0, 0)))

    grid_spec = pltpu.PrefetchScalarGridSpec(
        num_scalar_prefetch=1,
        grid=(n_steps,),
        in_specs=in_specs,
        out_specs=out_specs,
        scratch_shapes=[pltpu.VMEM((batch, d_model), jnp.float32)],
    )
    out, score = pl.pallas_call(
        kernel,
        out_shape=out_shape,
        grid_spec=grid_spec,
        compiler_params=pltpu.CompilerParams(
            dimension_semantics=("arbitrary",)),   # sequential A carry
    )(idx, *operands)
    return out, score


def vecdiff_decode_sequence(src, enc_memory, source_vector, params,
                            prev_prediction=None):
    """Fused full decode loop: out_i is fed back as prev_prediction of step i+1."""
    batch, seq, input_size = src.shape
    src_t = jnp.transpose(src, (1, 0, 2))       # one transpose for the whole sequence
    idx = jnp.arange(seq, dtype=jnp.int32)
    return _vecdiff_pallas(src_t, enc_memory, source_vector, params, idx,
                           prev0=prev_prediction)


def vecdiff_forward(i, src, enc_memory, prev_prediction, final_encoder_h,
                    params, source_vector=None):
    """Single-step forward matching VecdiffDecoder.forward(i, ...)."""
    del final_encoder_h  # unused in the PyTorch forward
    src_t = jnp.transpose(src, (1, 0, 2))
    idx = jnp.asarray(i, dtype=jnp.int32).reshape(1)
    out, score = _vecdiff_pallas(src_t, enc_memory, source_vector, params, idx,
                                 prev0=prev_prediction)
    return out[0], score[0]


def _pack_params(p, d_model, input_size):
    """Host-side packing of the per-gate weights into the fused-kernel slabs."""
    in_ = input_size
    d = d_model
    assert d == in_
    # X = [E | Bv | A]  (rows), columns = [fg | ig | og | ct]
    wbig = jnp.zeros((4 * in_, 4 * d), jnp.float32)
    wbig = wbig.at[0:2 * in_, 0:d].set(p["wfg_e"])
    wbig = wbig.at[0:2 * in_, d:2 * d].set(p["wig_e"])
    wbig = wbig.at[2 * in_:3 * in_, 2 * d:3 * d].set(p["wogb_w"])
    wbig = wbig.at[3 * in_:4 * in_, 2 * d:3 * d].set(p["woga_w"])
    wbig = wbig.at[2 * in_:3 * in_, 3 * d:4 * d].set(p["wctb_w"])

    cosw = jnp.zeros((2, 4 * d), jnp.float32)   # rows: c1, c2; zero for og/ct blocks
    cosw = cosw.at[:, 0:d].set(p["wfg_c"])
    cosw = cosw.at[:, d:2 * d].set(p["wig_c"])

    bias = jnp.concatenate(
        [p["wfg_b"], p["wig_b"], p["wogb_b"] + p["woga_b"], p["wctb_b"]], axis=-1)

    final_pack = jnp.concatenate(
        [p["final_w"].T, jnp.full((1, d), p["final_b"][0, 0], jnp.float32)], axis=0)

    return {"wbig": wbig, "cosw": cosw, "bias": bias, "final_pack": final_pack}


def init_params(key, d_model, input_size):
    """Deterministic synthetic parameters (pre-transposed layout) + packed slabs."""
    ks = jax.random.split(key, 8)
    s = 0.1

    def lin(k, fan_in, fan_out):
        kw, kb = jax.random.split(k)
        w = jax.random.normal(kw, (fan_in, fan_out), jnp.float32) * s
        b = jax.random.normal(kb, (1, fan_out), jnp.float32) * s
        return w, b

    winsrc_w, winsrc_b = lin(ks[0], input_size, d_model)
    wfg_full, wfg_b = lin(ks[1], 2 * input_size + 2, d_model)
    wig_full, wig_b = lin(ks[2], 2 * input_size + 2, d_model)
    wogb_w, wogb_b = lin(ks[3], input_size, d_model)
    woga_w, woga_b = lin(ks[4], input_size, d_model)
    wctb_w, wctb_b = lin(ks[5], input_size, d_model)
    fin_w, fin_b = lin(ks[6], d_model, 1)
    # NOTE: WcteI, WcteII, WogD and dropout exist in __init__ but are unused in forward.
    raw = {
        "winsrc_w": winsrc_w, "winsrc_b": winsrc_b,
        "wfg_e": wfg_full[:2 * input_size], "wfg_c": wfg_full[2 * input_size:], "wfg_b": wfg_b,
        "wig_e": wig_full[:2 * input_size], "wig_c": wig_full[2 * input_size:], "wig_b": wig_b,
        "wogb_w": wogb_w, "wogb_b": wogb_b,
        "woga_w": woga_w, "woga_b": woga_b,
        "wctb_w": wctb_w, "wctb_b": wctb_b,
        "final_w": fin_w, "final_b": fin_b,
    }
    raw.update(_pack_params(raw, d_model, input_size))
    return raw


def _reference_step(i, src, enc_memory, prev_prediction, params, source_vector):
    """Pure-JAX mirror of the PyTorch forward (unpacked weights) for correctness."""
    sv = source_vector
    if prev_prediction is None:
        pp = jnp.tanh(jnp.tanh(sv) @ params["winsrc_w"] + params["winsrc_b"])
        d = pp.shape[-1]
        to_norm = jnp.sqrt(DESIRED_AVG * d / jnp.sum(pp ** 2))
        mean = pp.mean(-1, keepdims=True)
        std = jnp.sqrt(jnp.sum((pp - mean) ** 2, -1, keepdims=True) / (d - 1))
        A = to_norm * (pp - mean) / (std + LN_EPS)
    else:
        A = prev_prediction
    Bv = src[:, i]
    D = A - Bv

    def cos(x, y):
        return jnp.sum(x * y, -1, keepdims=True) / jnp.sqrt(
            jnp.maximum(jnp.sum(x * x, -1, keepdims=True) *
                        jnp.sum(y * y, -1, keepdims=True), COS_EPS ** 2))

    c1, c2 = cos(A, Bv), cos(A, sv)
    E = enc_memory[i]
    fg = jax.nn.sigmoid(E @ params["wfg_e"] + c1 * params["wfg_c"][0:1]
                        + c2 * params["wfg_c"][1:2] + params["wfg_b"])
    ig = jax.nn.sigmoid(E @ params["wig_e"] + c1 * params["wig_c"][0:1]
                        + c2 * params["wig_c"][1:2] + params["wig_b"])
    og = jax.nn.sigmoid(Bv @ params["wogb_w"] + params["wogb_b"]
                        + A @ params["woga_w"] + params["woga_b"])
    ct = fg * A + ig * jnp.tanh(Bv @ params["wctb_w"] + params["wctb_b"])
    ht = og * jax.nn.sigmoid(ct)
    score = jax.nn.sigmoid(ht @ params["final_w"] + params["final_b"])
    return A - D * score, score


if __name__ == "__main__":
    # d_model must equal input_size for the PyTorch forward to typecheck (A - B, WogA(A)).
    batch, seq, d_model = 4, 8, 32
    input_size = d_model

    key = jax.random.PRNGKey(0)
    kp, ks, ke, kv = jax.random.split(key, 4)
    params = init_params(kp, d_model, input_size)

    src = jax.random.normal(ks, (batch, seq, input_size), jnp.float32)
    enc_memory = jax.random.normal(ke, (seq, batch, 2 * input_size), jnp.float32)
    source_vector = jax.random.normal(kv, (batch, input_size), jnp.float32)
    final_encoder_h = None  # unused by forward

    # --- fused full-sequence decode (one pallas_call, grid=(seq,)) ---
    out_seq, score_seq = vecdiff_decode_sequence(src, enc_memory, source_vector, params)
    jax.block_until_ready((out_seq, score_seq))
    assert out_seq.shape == (seq, batch, d_model)
    assert score_seq.shape == (seq, batch, 1)

    prev = None
    ref_outs, ref_scores = [], []
    for i in range(seq):
        o, sc = _reference_step(i, src, enc_memory, prev, params, source_vector)
        ref_outs.append(o)
        ref_scores.append(sc)
        prev = o
    ref_out_seq = jnp.stack(ref_outs)
    ref_score_seq = jnp.stack(ref_scores)
    assert jnp.allclose(out_seq, ref_out_seq, atol=2e-4, rtol=2e-4)
    assert jnp.allclose(score_seq, ref_score_seq, atol=2e-4, rtol=2e-4)

    # --- single-step module-faithful forward (prev_prediction=None path) ---
    i = 3
    out1, sc1 = vecdiff_forward(i, src, enc_memory, None, final_encoder_h,
                                params, source_vector=source_vector)
    jax.block_until_ready((out1, sc1))
    o1r, s1r = _reference_step(i, src, enc_memory, None, params, source_vector)
    assert out1.shape == (batch, d_model) and sc1.shape == (batch, 1)
    assert jnp.allclose(out1, o1r, atol=1e-4, rtol=1e-4)
    assert jnp.allclose(sc1, s1r, atol=1e-4, rtol=1e-4)

    # --- single-step forward with a given prev_prediction ---
    out2, sc2 = vecdiff_forward(i, src, enc_memory, out1, final_encoder_h,
                                params, source_vector=source_vector)
    jax.block_until_ready((out2, sc2))
    o2r, s2r = _reference_step(i, src, enc_memory, o1r, params, source_vector)
    assert jnp.allclose(out2, o2r, atol=1e-4, rtol=1e-4)
    assert jnp.allclose(sc2, s2r, atol=1e-4, rtol=1e-4)

    print("KERNEL_OK")
</pallas_src>

<mosaic_0001>
module attributes {stable_mosaic.version = 11 : i64} {
  func.func @kernel(%arg0: i32, %arg1: memref<8xi32, #tpu.memory_space<smem>>, %arg2: memref<4x32xf32, #tpu.memory_space<vmem>>, %arg3: memref<1x4x32xf32, #tpu.memory_space<vmem>>, %arg4: memref<1x4x64xf32, #tpu.memory_space<vmem>>, %arg5: memref<32x32xf32, #tpu.memory_space<vmem>>, %arg6: memref<1x32xf32, #tpu.memory_space<vmem>>, %arg7: memref<128x128xf32, #tpu.memory_space<vmem>>, %arg8: memref<2x128xf32, #tpu.memory_space<vmem>>, %arg9: memref<1x128xf32, #tpu.memory_space<vmem>>, %arg10: memref<2x32xf32, #tpu.memory_space<vmem>>, %arg11: memref<1x4x32xf32, #tpu.memory_space<vmem>>, %arg12: memref<1x4x1xf32, #tpu.memory_space<vmem>>, %arg13: memref<4x32xf32, #tpu.memory_space<vmem>>) attributes {dimension_semantics = [#tpu.dimension_semantics<arbitrary>], iteration_bounds = array<i64: 8>, scalar_prefetch = 1 : i64, scratch_operands = 1 : i64, tpu.core_type = #tpu.core_type<tc>, window_params = [{pipeline_mode = #tpu.pipeline_mode<synchronous>, transform_indices = @transform_0, window_bounds = array<i64: 4, 32>}, {transform_indices = @transform_1, window_bounds = array<i64: 1, 4, 32>}, {transform_indices = @transform_2, window_bounds = array<i64: 1, 4, 64>}, {pipeline_mode = #tpu.pipeline_mode<synchronous>, transform_indices = @transform_3, window_bounds = array<i64: 32, 32>}, {pipeline_mode = #tpu.pipeline_mode<synchronous>, transform_indices = @transform_4, window_bounds = array<i64: 1, 32>}, {pipeline_mode = #tpu.pipeline_mode<synchronous>, transform_indices = @transform_5, window_bounds = array<i64: 128, 128>}, {pipeline_mode = #tpu.pipeline_mode<synchronous>, transform_indices = @transform_6, window_bounds = array<i64: 2, 128>}, {pipeline_mode = #tpu.pipeline_mode<synchronous>, transform_indices = @transform_7, window_bounds = array<i64: 1, 128>}, {pipeline_mode = #tpu.pipeline_mode<synchronous>, transform_indices = @transform_8, window_bounds = array<i64: 2, 32>}, {transform_indices = @transform_9, window_bounds = array<i64: 1, 4, 32>}, {transform_indices = @transform_10, window_bounds = array<i64: 1, 4, 1>}]} {
    %c0_i32 = arith.constant 0 : i32
    %0 = arith.cmpi eq, %arg0, %c0_i32 : i32
    %1 = arith.extui %0 : i1 to i32
    %c0_i32_0 = arith.constant 0 : i32
    %2 = arith.cmpi ne, %1, %c0_i32_0 : i32
    scf.if %2 {
      %c0_43 = arith.constant 0 : index
      %c0_44 = arith.constant 0 : index
      %106 = vector.load %arg2[%c0_43, %c0_44] : memref<4x32xf32, #tpu.memory_space<vmem>>, vector<4x32xf32>
      %107 = math.tanh %106 : vector<4x32xf32>
      %c0_45 = arith.constant 0 : index
      %c0_46 = arith.constant 0 : index
      %108 = vector.load %arg5[%c0_45, %c0_46] : memref<32x32xf32, #tpu.memory_space<vmem>>, vector<32x32xf32>
      %cst_47 = arith.constant dense<0.000000e+00> : vector<4x32xf32>
      %109 = tpu.matmul %107, %108, %cst_47 {dimension_numbers = #tpu.dot_dimension_numbers<[1], [0], [0], [1], [0, 0, 1, 1], [], []>} : vector<4x32xf32>, vector<32x32xf32>, vector<4x32xf32> -> vector<4x32xf32>
      %c0_48 = arith.constant 0 : index
      %c0_49 = arith.constant 0 : index
      %110 = vector.load %arg6[%c0_48, %c0_49] : memref<1x32xf32, #tpu.memory_space<vmem>>, vector<1x32xf32>
      %111 = vector.broadcast %110 : vector<1x32xf32> to vector<4x32xf32>
      %112 = arith.addf %109, %111 : vector<4x32xf32>
      %113 = math.tanh %112 : vector<4x32xf32>
      %114 = arith.mulf %113, %113 : vector<4x32xf32>
      %cst_50 = arith.constant dense<0.000000e+00> : vector<4xf32>
      %115 = vector.multi_reduction <add>, %114, %cst_50 [1] : vector<4x32xf32> to vector<4xf32>
      %116 = vector.shape_cast %115 : vector<4xf32> to vector<4x1xf32>
      %cst_51 = arith.constant dense<0.000000e+00> : vector<1xf32>
      %117 = vector.multi_reduction <add>, %116, %cst_51 [0] : vector<4x1xf32> to vector<1xf32>
      %118 = vector.shape_cast %117 : vector<1xf32> to vector<1x1xf32>
      %cst_52 = arith.constant 6.400000e-02 : f32
      %119 = math.sqrt %cst_52 : f32
      %120 = math.rsqrt %118 : vector<1x1xf32>
      %121 = vector.broadcast %119 : f32 to vector<1x1xf32>
      %122 = arith.mulf %121, %120 : vector<1x1xf32>
      %cst_53 = arith.constant dense<0.000000e+00> : vector<4xf32>
      %123 = vector.multi_reduction <add>, %113, %cst_53 [1] : vector<4x32xf32> to vector<4xf32>
      %124 = vector.shape_cast %123 : vector<4xf32> to vector<4x1xf32>
      %cst_54 = arith.constant 3.200000e+01 : f32
      %125 = vector.broadcast %cst_54 : f32 to vector<4x1xf32>
      %126 = arith.divf %124, %125 : vector<4x1xf32>
      %127 = vector.broadcast %126 : vector<4x1xf32> to vector<4x32xf32>
      %128 = arith.subf %113, %127 : vector<4x32xf32>
      %129 = vector.broadcast %126 : vector<4x1xf32> to vector<4x32xf32>
      %130 = arith.subf %113, %129 : vector<4x32xf32>
      %131 = arith.mulf %128, %130 : vector<4x32xf32>
      %cst_55 = arith.constant dense<0.000000e+00> : vector<4xf32>
      %132 = vector.multi_reduction <add>, %131, %cst_55 [1] : vector<4x32xf32> to vector<4xf32>
      %133 = vector.shape_cast %132 : vector<4xf32> to vector<4x1xf32>
      %cst_56 = arith.constant 3.100000e+01 : f32
      %134 = vector.broadcast %cst_56 : f32 to vector<4x1xf32>
      %135 = arith.divf %133, %134 : vector<4x1xf32>
      %136 = math.sqrt %135 : vector<4x1xf32>
      %137 = vector.broadcast %126 : vector<4x1xf32> to vector<4x32xf32>
      %138 = arith.subf %113, %137 : vector<4x32xf32>
      %139 = vector.broadcast %122 : vector<1x1xf32> to vector<4x32xf32>
      %140 = arith.mulf %139, %138 : vector<4x32xf32>
      %cst_57 = arith.constant 9.99999997E-7 : f32
      %141 = vector.broadcast %cst_57 : f32 to vector<4x1xf32>
      %142 = arith.addf %136, %141 : vector<4x1xf32>
      %143 = vector.broadcast %142 : vector<4x1xf32> to vector<4x32xf32>
      %144 = arith.divf %140, %143 : vector<4x32xf32>
      %c0_58 = arith.constant 0 : index
      %c0_59 = arith.constant 0 : index
      %145 = vector.load %arg13[%c0_58, %c0_59] : memref<4x32xf32, #tpu.memory_space<vmem>>, vector<4x32xf32>
      tpu.vector_store %arg13[%c0_58, %c0_59], %144 {strides = array<i32>} : memref<4x32xf32, #tpu.memory_space<vmem>>, vector<4x32xf32>,
    } else {
    }
    %c0 = arith.constant 0 : index
    %c0_1 = arith.constant 0 : index
    %3 = vector.load %arg13[%c0, %c0_1] : memref<4x32xf32, #tpu.memory_space<vmem>>, vector<4x32xf32>
    %c0_2 = arith.constant 0 : index
    %c0_3 = arith.constant 0 : index
    %4 = vector.load %arg2[%c0_2, %c0_3] : memref<4x32xf32, #tpu.memory_space<vmem>>, vector<4x32xf32>
    %c0_4 = arith.constant 0 : index
    %c0_5 = arith.constant 0 : index
    %c0_6 = arith.constant 0 : index
    %5 = vector.load %arg3[%c0_4, %c0_5, %c0_6] : memref<1x4x32xf32, #tpu.memory_space<vmem>>, vector<1x4x32xf32>
    %6 = vector.shape_cast %5 : vector<1x4x32xf32> to vector<4x32xf32>
    %c0_7 = arith.constant 0 : index
    %c0_8 = arith.constant 0 : index
    %c0_9 = arith.constant 0 : index
    %7 = vector.load %arg4[%c0_7, %c0_8, %c0_9] : memref<1x4x64xf32, #tpu.memory_space<vmem>>, vector<1x4x64xf32>
    %8 = vector.shape_cast %7 : vector<1x4x64xf32> to vector<4x64xf32>
    %9 = arith.subf %3, %6 : vector<4x32xf32>
    %10 = arith.mulf %3, %6 : vector<4x32xf32>
    %cst = arith.constant dense<0.000000e+00> : vector<4xf32>
    %11 = vector.multi_reduction <add>, %10, %cst [1] : vector<4x32xf32> to vector<4xf32>
    %12 = vector.shape_cast %11 : vector<4xf32> to vector<4x1xf32>
    %13 = arith.mulf %3, %3 : vector<4x32xf32>
    %cst_10 = arith.constant dense<0.000000e+00> : vector<4xf32>
    %14 = vector.multi_reduction <add>, %13, %cst_10 [1] : vector<4x32xf32> to vector<4xf32>
    %15 = vector.shape_cast %14 : vector<4xf32> to vector<4x1xf32>
    %16 = arith.mulf %6, %6 : vector<4x32xf32>
    %cst_11 = arith.constant dense<0.000000e+00> : vector<4xf32>
    %17 = vector.multi_reduction <add>, %16, %cst_11 [1] : vector<4x32xf32> to vector<4xf32>
    %18 = vector.shape_cast %17 : vector<4xf32> to vector<4x1xf32>
    %19 = arith.mulf %15, %18 : vector<4x1xf32>
    %cst_12 = arith.constant 1.000000e-16 : f32
    %20 = vector.broadcast %cst_12 : f32 to vector<4x1xf32>
    %21 = arith.maximumf %19, %20 : vector<4x1xf32>
    %22 = math.rsqrt %21 : vector<4x1xf32>
    %23 = arith.mulf %12, %22 : vector<4x1xf32>
    %24 = arith.mulf %3, %4 : vector<4x32xf32>
    %cst_13 = arith.constant dense<0.000000e+00> : vector<4xf32>
    %25 = vector.multi_reduction <add>, %24, %cst_13 [1] : vector<4x32xf32> to vector<4xf32>
    %26 = vector.shape_cast %25 : vector<4xf32> to vector<4x1xf32>
    %27 = arith.mulf %3, %3 : vector<4x32xf32>
    %cst_14 = arith.constant dense<0.000000e+00> : vector<4xf32>
    %28 = vector.multi_reduction <add>, %27, %cst_14 [1] : vector<4x32xf32> to vector<4xf32>
    %29 = vector.shape_cast %28 : vector<4xf32> to vector<4x1xf32>
    %30 = arith.mulf %4, %4 : vector<4x32xf32>
    %cst_15 = arith.constant dense<0.000000e+00> : vector<4xf32>
    %31 = vector.multi_reduction <add>, %30, %cst_15 [1] : vector<4x32xf32> to vector<4xf32>
    %32 = vector.shape_cast %31 : vector<4xf32> to vector<4x1xf32>
    %33 = arith.mulf %29, %32 : vector<4x1xf32>
    %cst_16 = arith.constant 1.000000e-16 : f32
    %34 = vector.broadcast %cst_16 : f32 to vector<4x1xf32>
    %35 = arith.maximumf %33, %34 : vector<4x1xf32>
    %36 = math.rsqrt %35 : vector<4x1xf32>
    %37 = arith.mulf %26, %36 : vector<4x1xf32>
    %38 = tpu.concatenate %8, %6, %3 in 1 : vector<4x64xf32>, vector<4x32xf32>, vector<4x32xf32> -> vector<4x128xf32>
    %c0_17 = arith.constant 0 : index
    %c0_18 = arith.constant 0 : index
    %39 = vector.load %arg7[%c0_17, %c0_18] : memref<128x128xf32, #tpu.memory_space<vmem>>, vector<128x128xf32>
    %cst_19 = arith.constant dense<0.000000e+00> : vector<4x128xf32>
    %40 = tpu.matmul %38, %39, %cst_19 {dimension_numbers = #tpu.dot_dimension_numbers<[1], [0], [0], [1], [0, 0, 1, 1], [], []>} : vector<4x128xf32>, vector<128x128xf32>, vector<4x128xf32> -> vector<4x128xf32>
    %c0_20 = arith.constant 0 : index
    %c0_21 = arith.constant 0 : index
    %41 = vector.load %arg9[%c0_20, %c0_21] : memref<1x128xf32, #tpu.memory_space<vmem>>, vector<1x128xf32>
    %42 = vector.broadcast %41 : vector<1x128xf32> to vector<4x128xf32>
    %43 = arith.addf %40, %42 : vector<4x128xf32>
    %c0_22 = arith.constant 0 : index
    %c0_23 = arith.constant 0 : index
    %44 = vector.load %arg8[%c0_22, %c0_23] : memref<2x128xf32, #tpu.memory_space<vmem>>, vector<1x128xf32>
    %45 = vector.broadcast %23 : vector<4x1xf32> to vector<4x128xf32>
    %46 = vector.broadcast %44 : vector<1x128xf32> to vector<4x128xf32>
    %47 = arith.mulf %45, %46 : vector<4x128xf32>
    %48 = arith.addf %43, %47 : vector<4x128xf32>
    %c1 = arith.constant 1 : index
    %c0_24 = arith.constant 0 : index
    %49 = vector.load %arg8[%c1, %c0_24] : memref<2x128xf32, #tpu.memory_space<vmem>>, vector<1x128xf32>
    %50 = vector.broadcast %37 : vector<4x1xf32> to vector<4x128xf32>
    %51 = vector.broadcast %49 : vector<1x128xf32> to vector<4x128xf32>
    %52 = arith.mulf %50, %51 : vector<4x128xf32>
    %53 = arith.addf %48, %52 : vector<4x128xf32>
    %54 = vector.extract_strided_slice %53 {offsets = [0, 0], sizes = [4, 32], strides = [1, 1]} : vector<4x128xf32> to vector<4x32xf32>
    %55 = arith.negf %54 : vector<4x32xf32>
    %56 = math.exp %55 : vector<4x32xf32>
    %cst_25 = arith.constant 1.000000e+00 : f32
    %57 = vector.broadcast %cst_25 : f32 to vector<4x32xf32>
    %58 = arith.addf %57, %56 : vector<4x32xf32>
    %59 = arith.divf %57, %58 : vector<4x32xf32>
    %60 = vector.extract_strided_slice %53 {offsets = [0, 32], sizes = [4, 32], strides = [1, 1]} : vector<4x128xf32> to vector<4x32xf32>
    %61 = arith.negf %60 : vector<4x32xf32>
    %62 = math.exp %61 : vector<4x32xf32>
    %cst_26 = arith.constant 1.000000e+00 : f32
    %63 = vector.broadcast %cst_26 : f32 to vector<4x32xf32>
    %64 = arith.addf %63, %62 : vector<4x32xf32>
    %65 = arith.divf %63, %64 : vector<4x32xf32>
    %66 = vector.extract_strided_slice %53 {offsets = [0, 64], sizes = [4, 32], strides = [1, 1]} : vector<4x128xf32> to vector<4x32xf32>
    %67 = arith.negf %66 : vector<4x32xf32>
    %68 = math.exp %67 : vector<4x32xf32>
    %cst_27 = arith.constant 1.000000e+00 : f32
    %69 = vector.broadcast %cst_27 : f32 to vector<4x32xf32>
    %70 = arith.addf %69, %68 : vector<4x32xf32>
    %71 = arith.divf %69, %70 : vector<4x32xf32>
    %72 = arith.mulf %59, %3 : vector<4x32xf32>
    %73 = vector.extract_strided_slice %53 {offsets = [0, 96], sizes = [4, 32], strides = [1, 1]} : vector<4x128xf32> to vector<4x32xf32>
    %74 = math.tanh %73 : vector<4x32xf32>
    %75 = arith.mulf %65, %74 : vector<4x32xf32>
    %76 = arith.addf %72, %75 : vector<4x32xf32>
    %77 = arith.negf %76 : vector<4x32xf32>
    %78 = math.exp %77 : vector<4x32xf32>
    %cst_28 = arith.constant 1.000000e+00 : f32
    %79 = vector.broadcast %cst_28 : f32 to vector<4x32xf32>
    %80 = arith.addf %79, %78 : vector<4x32xf32>
    %81 = arith.divf %79, %80 : vector<4x32xf32>
    %82 = arith.mulf %71, %81 : vector<4x32xf32>
    %c0_29 = arith.constant 0 : index
    %c0_30 = arith.constant 0 : index
    %83 = vector.load %arg10[%c0_29, %c0_30] : memref<2x32xf32, #tpu.memory_space<vmem>>, vector<1x32xf32>
    %84 = vector.broadcast %83 : vector<1x32xf32> to vector<4x32xf32>
    %85 = arith.mulf %82, %84 : vector<4x32xf32>
    %cst_31 = arith.constant dense<0.000000e+00> : vector<4xf32>
    %86 = vector.multi_reduction <add>, %85, %cst_31 [1] : vector<4x32xf32> to vector<4xf32>
    %87 = vector.shape_cast %86 : vector<4xf32> to vector<4x1xf32>
    %c1_32 = arith.constant 1 : index
    %c0_33 = arith.constant 0 : index
    %88 = vector.load %arg10[%c1_32, %c0_33] : memref<2x32xf32, #tpu.memory_space<vmem>>, vector<1x1xf32>
    %89 = vector.broadcast %88 : vector<1x1xf32> to vector<4x1xf32>
    %90 = arith.addf %87, %89 : vector<4x1xf32>
    %91 = arith.negf %90 : vector<4x1xf32>
    %92 = math.exp %91 : vector<4x1xf32>
    %cst_34 = arith.constant 1.000000e+00 : f32
    %93 = vector.broadcast %cst_34 : f32 to vector<4x1xf32>
    %94 = arith.addf %93, %92 : vector<4x1xf32>
    %95 = arith.divf %93, %94 : vector<4x1xf32>
    %96 = vector.broadcast %95 : vector<4x1xf32> to vector<4x32xf32>
    %97 = arith.mulf %9, %96 : vector<4x32xf32>
    %98 = arith.subf %3, %97 : vector<4x32xf32>
    %c0_35 = arith.constant 0 : index
    %c0_36 = arith.constant 0 : index
    %c0_37 = arith.constant 0 : index
    %99 = vector.load %arg11[%c0_35, %c0_36, %c0_37] : memref<1x4x32xf32, #tpu.memory_space<vmem>>, vector<1x4x32xf32>
    %100 = vector.shape_cast %99 : vector<1x4x32xf32> to vector<4x32xf32>
    %101 = vector.shape_cast %98 : vector<4x32xf32> to vector<1x4x32xf32>
    tpu.vector_store %arg11[%c0_35, %c0_36, %c0_37], %101 {strides = array<i32>} : memref<1x4x32xf32, #tpu.memory_space<vmem>>, vector<1x4x32xf32>,
    %c0_38 = arith.constant 0 : index
    %c0_39 = arith.constant 0 : index
    %c0_40 = arith.constant 0 : index
    %102 = vector.load %arg12[%c0_38, %c0_39, %c0_40] : memref<1x4x1xf32, #tpu.memory_space<vmem>>, vector<1x4x1xf32>
    %103 = vector.shape_cast %102 : vector<1x4x1xf32> to vector<4x1xf32>
    %104 = vector.shape_cast %95 : vector<4x1xf32> to vector<1x4x1xf32>
    tpu.vector_store %arg12[%c0_38, %c0_39, %c0_40], %104 {strides = array<i32>} : memref<1x4x1xf32, #tpu.memory_space<vmem>>, vector<1x4x1xf32>,
    %c0_41 = arith.constant 0 : index
    %c0_42 = arith.constant 0 : index
    %105 = vector.load %arg13[%c0_41, %c0_42] : memref<4x32xf32, #tpu.memory_space<vmem>>, vector<4x32xf32>
    tpu.vector_store %arg13[%c0_41, %c0_42], %98 {strides = array<i32>} : memref<4x32xf32, #tpu.memory_space<vmem>>, vector<4x32xf32>,
    return
  }
  func.func @transform_0(%arg0: i32, %arg1: memref<8xi32, #tpu.memory_space<smem>>) -> (i32, i32) {
    %c0_i32 = arith.constant 0 : i32
    %c0_i32_0 = arith.constant 0 : i32
    %c0_i32_1 = arith.constant 0 : i32
    return %c0_i32, %c0_i32_0 : i32, i32
  }
  func.func @transform_1(%arg0: i32, %arg1: memref<8xi32, #tpu.memory_space<smem>>) -> (i32, i32, i32) {
    %0 = arith.index_cast %arg0 : i32 to index
    %1 = memref.load %arg1[%0] : memref<8xi32, #tpu.memory_space<smem>>
    %c0_i32 = arith.constant 0 : i32
    %c0_i32_0 = arith.constant 0 : i32
    %c0_i32_1 = arith.constant 0 : i32
    return %1, %c0_i32, %c0_i32_0 : i32, i32, i32
  }
  func.func @transform_2(%arg0: i32, %arg1: memref<8xi32, #tpu.memory_space<smem>>) -> (i32, i32, i32) {
    %0 = arith.index_cast %arg0 : i32 to index
    %1 = memref.load %arg1[%0] : memref<8xi32, #tpu.memory_space<smem>>
    %c0_i32 = arith.constant 0 : i32
    %c0_i32_0 = arith.constant 0 : i32
    %c0_i32_1 = arith.constant 0 : i32
    return %1, %c0_i32, %c0_i32_0 : i32, i32, i32
  }
  func.func @transform_3(%arg0: i32, %arg1: memref<8xi32, #tpu.memory_space<smem>>) -> (i32, i32) {
    %c0_i32 = arith.constant 0 : i32
    %c0_i32_0 = arith.constant 0 : i32
    %c0_i32_1 = arith.constant 0 : i32
    return %c0_i32, %c0_i32_0 : i32, i32
  }
  func.func @transform_4(%arg0: i32, %arg1: memref<8xi32, #tpu.memory_space<smem>>) -> (i32, i32) {
    %c0_i32 = arith.constant 0 : i32
    %c0_i32_0 = arith.constant 0 : i32
    %c0_i32_1 = arith.constant 0 : i32
    return %c0_i32, %c0_i32_0 : i32, i32
  }
  func.func @transform_5(%arg0: i32, %arg1: memref<8xi32, #tpu.memory_space<smem>>) -> (i32, i32) {
    %c0_i32 = arith.constant 0 : i32
    %c0_i32_0 = arith.constant 0 : i32
    %c0_i32_1 = arith.constant 0 : i32
    return %c0_i32, %c0_i32_0 : i32, i32
  }
  func.func @transform_6(%arg0: i32, %arg1: memref<8xi32, #tpu.memory_space<smem>>) -> (i32, i32) {
    %c0_i32 = arith.constant 0 : i32
    %c0_i32_0 = arith.constant 0 : i32
    %c0_i32_1 = arith.constant 0 : i32
    return %c0_i32, %c0_i32_0 : i32, i32
  }
  func.func @transform_7(%arg0: i32, %arg1: memref<8xi32, #tpu.memory_space<smem>>) -> (i32, i32) {
    %c0_i32 = arith.constant 0 : i32
    %c0_i32_0 = arith.constant 0 : i32
    %c0_i32_1 = arith.constant 0 : i32
    return %c0_i32, %c0_i32_0 : i32, i32
  }
  func.func @transform_8(%arg0: i32, %arg1: memref<8xi32, #tpu.memory_space<smem>>) -> (i32, i32) {
    %c0_i32 = arith.constant 0 : i32
    %c0_i32_0 = arith.constant 0 : i32
    %c0_i32_1 = arith.constant 0 : i32
    return %c0_i32, %c0_i32_0 : i32, i32
  }
  func.func @transform_9(%arg0: i32, %arg1: memref<8xi32, #tpu.memory_space<smem>>) -> (i32, i32, i32) {
    %c0_i32 = arith.constant 0 : i32
    %c0_i32_0 = arith.constant 0 : i32
    %c0_i32_1 = arith.constant 0 : i32
    return %arg0, %c0_i32, %c0_i32_0 : i32, i32, i32
  }
  func.func @transform_10(%arg0: i32, %arg1: memref<8xi32, #tpu.memory_space<smem>>) -> (i32, i32, i32) {
    %c0_i32 = arith.constant 0 : i32
    %c0_i32_0 = arith.constant 0 : i32
    %c0_i32_1 = arith.constant 0 : i32
    return %arg0, %c0_i32, %c0_i32_0 : i32, i32, i32
  }
}

</mosaic_0001>

<llo_original>
// kernel: tpu_custom_call.1
$region0: #{tpu_custom_call.1}
  #allocation0 [shape = 'u32[]', space=smem, size = 0x4, offset = 0x4, fixed_abs, tag = 'smem constant byte address 0x4 - core index']
  #allocation1 [shape = 'u32[144,128]{1,0:T(1,128)}', space=vmem, size = 0x12000, scoped, tag = 'internal scratch']
  #allocation2 [shape = 'f32[4,32]{1,0:T(4,128)}', space=vmem, size = 0x800, scoped, tag = 'scratch operand']
  #allocation3 [shape = 's32[1]{0}', space=sflag, size = 0x4, scoped, tag = 'scoped memory for tpu_custom_call.1']
  #allocation4 [shape = 'u8[512]{0}', space=smem, size = 0x200, scoped, tag = 'prefetched SMEM operand 0']
  %s0 = inlined_call_operand.hbm [shape: s32[8], index: 0, kind: input, shape index: {}]
  %s1 = inlined_call_operand.hbm [shape: f32[4,32], index: 1, kind: input, shape index: {}]
  %s2 = inlined_call_operand.hbm [shape: f32[8,4,32], index: 2, kind: input, shape index: {}]
  %s3 = inlined_call_operand.hbm [shape: f32[8,4,64], index: 3, kind: input, shape index: {}]
  %s4 = inlined_call_operand.hbm [shape: f32[32,32], index: 4, kind: input, shape index: {}]
  %s5 = inlined_call_operand.vmem [shape: f32[1,32], index: 5, kind: input, shape index: {}]
  %s6 = inlined_call_operand.hbm [shape: f32[128,128], index: 6, kind: input, shape index: {}]
  %s7 = inlined_call_operand.vmem [shape: f32[2,128], index: 7, kind: input, shape index: {}]
  %s8 = inlined_call_operand.vmem [shape: f32[1,128], index: 8, kind: input, shape index: {}]
  %s9 = inlined_call_operand.vmem [shape: f32[2,32], index: 9, kind: input, shape index: {}]
  %s10 = inlined_call_operand.hbm [shape: f32[8,4,32], index: 10, kind: output, shape index: {0}]
  %s11 = inlined_call_operand.vmem [shape: f32[8,4,1], index: 11, kind: output, shape index: {1}]
  %12 = xla_tuple %s10, %s11
  %s13 = sld [smem:[#allocation0]]
  $region101: #{tpu_custom_call.1} parent=0
    _
  %s15 = ssub.s32 1, %s13
  %s16 = scalar_select 0, %s15, %s13
  %18 = dma.hbm_to_smem %s0, 16, [#allocation4], [#allocation3]
  %19 = dma.done [#allocation3], 16
  %20 = sfence
  $region1: #{tpu_custom_call.1} parent=0
    #allocation5 [shape = 'u8[2048]{0}', space=vmem, size = 0x800, scoped, tag = 'input window, operand 1, single buffered']
    #allocation6 [shape = 's32[2]{0}', space=sflag, size = 0x8, scoped, tag = 'scoped memory for tpu_custom_call.1']
    #allocation7 [shape = 's32[2]{0}', space=sflag, size = 0x8, scoped, tag = 'scoped memory for tpu_custom_call.1']
    #allocation8 [shape = 'u8[4096]{0}', space=vmem, size = 0x1000, scoped, tag = 'input window, operand 2']
    #allocation9 [shape = 's32[2]{0}', space=sflag, size = 0x8, scoped, tag = 'scoped memory for tpu_custom_call.1']
    #allocation10 [shape = 'u8[4096]{0}', space=vmem, size = 0x1000, scoped, tag = 'input window, operand 3']
    #allocation11 [shape = 'u8[16384]{0}', space=vmem, size = 0x4000, scoped, tag = 'input window, operand 4, single buffered']
    #allocation12 [shape = 's32[1]{0}', space=sflag, size = 0x4, scoped, tag = 'scoped memory for tpu_custom_call.1']
    #allocation13 [shape = 'u8[65536]{0}', space=vmem, size = 0x10000, scoped, tag = 'input window, operand 6, single buffered']
    #allocation14 [shape = 'u8[4096]{0}', space=vmem, size = 0x1000, scoped, tag = 'output window, operand 0']
    %21 = vsyncpa [#allocation6], 0
    %22 = vsyncpa [#allocation9], 0
    %s23 = scalar_lea.sflag [#allocation9], 1
    %24 = vsyncpa %s23, 0
    %25 = vsyncpa [#allocation12], 0
    %26 = vsyncpa [#allocation7], 0
    %s27 = scalar_lea.sflag [#allocation7], 1
    %28 = vsyncpa %s27, 0
    loop: start=0, step=1, limit=10
    $region2: #{tpu_custom_call.1} parent=1 // loop_pre_header
      _
    $region3: #{tpu_custom_call.1} parent=1 // loop_header
      %s30 = sphi 0, %s34
      %p31 = scmp.ge.s32.totalorder %s30, 10
      %s38 = sphi 0, %s38
      %s40 = sphi 0, %s38
      %s41 = sphi 0, %s40
      %s55 = sphi 0, %s41
      %s63 = sphi 0, %s65
      %s66 = sphi 0, %s63
      %s67 = sphi 0, %s66
      %s83 = sphi 0, %s67
      %s91 = sphi 0, %s93
      %s94 = sphi 0, %s91
      %s95 = sphi 0, %s94
      %s111 = sphi 0, %s95
      %s115 = sphi 0, %s115
      %s117 = sphi 0, %s115
      %s118 = sphi 0, %s117
      %s132 = sphi 0, %s118
      %s136 = sphi 0, %s136
      %s138 = sphi 0, %s136
      %s139 = sphi 0, %s138
      %s153 = sphi 0, %s139
      %s157 = sphi 0, %s157
      %s159 = sphi 0, %s157
      %s160 = sphi 0, %s159
      %s174 = sphi 0, %s160
      %s178 = sphi 0, %s178
      %s180 = sphi 0, %s178
      %s181 = sphi 0, %s180
      %s195 = sphi 0, %s181
      %s199 = sphi 0, %s199
      %s201 = sphi 0, %s199
      %s202 = sphi 0, %s201
      %s216 = sphi 0, %s202
      %s220 = sphi 0, %s220
      %s222 = sphi 0, %s220
      %s223 = sphi 0, %s222
      %s237 = sphi 0, %s223
      %s243 = sphi 0, %s245
      %s246 = sphi 0, %s243
      %s247 = sphi 0, %s246
      %s263 = sphi 0, %s247
      %s269 = sphi 0, %s271
      %s272 = sphi 0, %s269
      %s273 = sphi 0, %s272
      %s289 = sphi 0, %s273
    $region4: #{tpu_custom_call.1} parent=1 // loop_header_branch
      %33 = sbr.rel (%p31) target = $region8
    $region5: #{tpu_custom_call.1} parent=1 // loop_body
      %s35 = ssub.s32 %s30, 1
      %s36 = ssub.s32 %s30, 2
      %s37 = sadd.s32 %s30, 1
      %s39 = sadd.s32 %s38, 1
      %p42 = scmp.eq.s32.totalorder %s30, 7
      %p43 = scmp.ne.s32.totalorder %s38, %s40
      %p44 = scmp.eq.s32.totalorder %s30, 0
      %p45 = por %p43, %p44
      %p46 = scmp.ne.s32.totalorder %s38, %s40
      %p47 = scmp.eq.s32.totalorder %s35, 7
      %p48 = por %p46, %p47
      %p49 = scmp.ne.s32.totalorder %s40, %s41
      %p50 = scmp.eq.s32.totalorder %s35, 0
      %p51 = por %p49, %p50
      %p52 = scmp.ne.s32.totalorder %s40, %s41
      %p53 = scmp.eq.s32.totalorder %s36, 7
      %p54 = por %p52, %p53
      %p56 = scmp.ne.s32.totalorder %s41, %s55
      %p57 = scmp.eq.s32.totalorder %s36, 0
      %p58 = por %p56, %p57
      %s59 = sld [smem:[#allocation4 + %s30]]
      %s60 = sld [smem:[#allocation4 + %s37]]
      %s61 = ssub.s32 %s59, %s60
      %p62 = scmp.eq.s32.totalorder %s61, 0
      %s64 = sadd.s32 %s63, 1
      %s65 = scalar_select %p62, %s63, %s64
      %p68 = pneg %p62
      %p69 = scmp.eq.s32.totalorder %s30, 7
      %p70 = por %p68, %p69
      %p71 = scmp.ne.s32.totalorder %s63, %s66
      %p72 = scmp.eq.s32.totalorder %s30, 0
      %p73 = por %p71, %p72
      %p74 = scmp.ne.s32.totalorder %s63, %s66
      %p75 = scmp.eq.s32.totalorder %s35, 7
      %p76 = por %p74, %p75
      %p77 = scmp.ne.s32.totalorder %s66, %s67
      %p78 = scmp.eq.s32.totalorder %s35, 0
      %p79 = por %p77, %p78
      %p80 = scmp.ne.s32.totalorder %s66, %s67
      %p81 = scmp.eq.s32.totalorder %s36, 7
      %p82 = por %p80, %p81
      %p84 = scmp.ne.s32.totalorder %s67, %s83
      %p85 = scmp.eq.s32.totalorder %s36, 0
      %p86 = por %p84, %p85
      %s87 = sld [smem:[#allocation4 + %s30]]
      %s88 = sld [smem:[#allocation4 + %s37]]
      %s89 = ssub.s32 %s87, %s88
      %p90 = scmp.eq.s32.totalorder %s89, 0
      %s92 = sadd.s32 %s91, 1
      %s93 = scalar_select %p90, %s91, %s92
      %p96 = pneg %p90
      %p97 = scmp.eq.s32.totalorder %s30, 7
      %p98 = por %p96, %p97
      %p99 = scmp.ne.s32.totalorder %s91, %s94
      %p100 = scmp.eq.s32.totalorder %s30, 0
      %p101 = por %p99, %p100
      %p102 = scmp.ne.s32.totalorder %s91, %s94
      %p103 = scmp.eq.s32.totalorder %s35, 7
      %p104 = por %p102, %p103
      %p105 = scmp.ne.s32.totalorder %s94, %s95
      %p106 = scmp.eq.s32.totalorder %s35, 0
      %p107 = por %p105, %p106
      %p108 = scmp.ne.s32.totalorder %s94, %s95
      %p109 = scmp.eq.s32.totalorder %s36, 7
      %p110 = por %p108, %p109
      %p112 = scmp.ne.s32.totalorder %s95, %s111
      %p113 = scmp.eq.s32.totalorder %s36, 0
      %p114 = por %p112, %p113
      %s116 = sadd.s32 %s115, 1
      %p119 = scmp.eq.s32.totalorder %s30, 7
      %p120 = scmp.ne.s32.totalorder %s115, %s117
      %p121 = scmp.eq.s32.totalorder %s30, 0
      %p122 = por %p120, %p121
      %p123 = scmp.ne.s32.totalorder %s115, %s117
      %p124 = scmp.eq.s32.totalorder %s35, 7
      %p125 = por %p123, %p124
      %p126 = scmp.ne.s32.totalorder %s117, %s118
      %p127 = scmp.eq.s32.totalorder %s35, 0
      %p128 = por %p126, %p127
      %p129 = scmp.ne.s32.totalorder %s117, %s118
      %p130 = scmp.eq.s32.totalorder %s36, 7
      %p131 = por %p129, %p130
      %p133 = scmp.ne.s32.totalorder %s118, %s132
      %p134 = scmp.eq.s32.totalorder %s36, 0
      %p135 = por %p133, %p134
      %s137 = sadd.s32 %s136, 1
      %p140 = scmp.eq.s32.totalorder %s30, 7
      %p141 = scmp.ne.s32.totalorder %s136, %s138
      %p142 = scmp.eq.s32.totalorder %s30, 0
      %p143 = por %p141, %p142
      %p144 = scmp.ne.s32.totalorder %s136, %s138
      %p145 = scmp.eq.s32.totalorder %s35, 7
      %p146 = por %p144, %p145
      %p147 = scmp.ne.s32.totalorder %s138, %s139
      %p148 = scmp.eq.s32.totalorder %s35, 0
      %p149 = por %p147, %p148
      %p150 = scmp.ne.s32.totalorder %s138, %s139
      %p151 = scmp.eq.s32.totalorder %s36, 7
      %p152 = por %p150, %p151
      %p154 = scmp.ne.s32.totalorder %s139, %s153
      %p155 = scmp.eq.s32.totalorder %s36, 0
      %p156 = por %p154, %p155
      %s158 = sadd.s32 %s157, 1
      %p161 = scmp.eq.s32.totalorder %s30, 7
      %p162 = scmp.ne.s32.totalorder %s157, %s159
      %p163 = scmp.eq.s32.totalorder %s30, 0
      %p164 = por %p162, %p163
      %p165 = scmp.ne.s32.totalorder %s157, %s159
      %p166 = scmp.eq.s32.totalorder %s35, 7
      %p167 = por %p165, %p166
      %p168 = scmp.ne.s32.totalorder %s159, %s160
      %p169 = scmp.eq.s32.totalorder %s35, 0
      %p170 = por %p168, %p169
      %p171 = scmp.ne.s32.totalorder %s159, %s160
      %p172 = scmp.eq.s32.totalorder %s36, 7
      %p173 = por %p171, %p172
      %p175 = scmp.ne.s32.totalorder %s160, %s174
      %p176 = scmp.eq.s32.totalorder %s36, 0
      %p177 = por %p175, %p176
      %s179 = sadd.s32 %s178, 1
      %p182 = scmp.eq.s32.totalorder %s30, 7
      %p183 = scmp.ne.s32.totalorder %s178, %s180
      %p184 = scmp.eq.s32.totalorder %s30, 0
      %p185 = por %p183, %p184
      %p186 = scmp.ne.s32.totalorder %s178, %s180
      %p187 = scmp.eq.s32.totalorder %s35, 7
      %p188 = por %p186, %p187
      %p189 = scmp.ne.s32.totalorder %s180, %s181
      %p190 = scmp.eq.s32.totalorder %s35, 0
      %p191 = por %p189, %p190
      %p192 = scmp.ne.s32.totalorder %s180, %s181
      %p193 = scmp.eq.s32.totalorder %s36, 7
      %p194 = por %p192, %p193
      %p196 = scmp.ne.s32.totalorder %s181, %s195
      %p197 = scmp.eq.s32.totalorder %s36, 0
      %p198 = por %p196, %p197
      %s200 = sadd.s32 %s199, 1
      %p203 = scmp.eq.s32.totalorder %s30, 7
      %p204 = scmp.ne.s32.totalorder %s199, %s201
      %p205 = scmp.eq.s32.totalorder %s30, 0
      %p206 = por %p204, %p205
      %p207 = scmp.ne.s32.totalorder %s199, %s201
      %p208 = scmp.eq.s32.totalorder %s35, 7
      %p209 = por %p207, %p208
      %p210 = scmp.ne.s32.totalorder %s201, %s202
      %p211 = scmp.eq.s32.totalorder %s35, 0
      %p212 = por %p210, %p211
      %p213 = scmp.ne.s32.totalorder %s201, %s202
      %p214 = scmp.eq.s32.totalorder %s36, 7
      %p215 = por %p213, %p214
      %p217 = scmp.ne.s32.totalorder %s202, %s216
      %p218 = scmp.eq.s32.totalorder %s36, 0
      %p219 = por %p217, %p218
      %s221 = sadd.s32 %s220, 1
      %p224 = scmp.eq.s32.totalorder %s30, 7
      %p225 = scmp.ne.s32.totalorder %s220, %s222
      %p226 = scmp.eq.s32.totalorder %s30, 0
      %p227 = por %p225, %p226
      %p228 = scmp.ne.s32.totalorder %s220, %s222
      %p229 = scmp.eq.s32.totalorder %s35, 7
      %p230 = por %p228, %p229
      %p231 = scmp.ne.s32.totalorder %s222, %s223
      %p232 = scmp.eq.s32.totalorder %s35, 0
      %p233 = por %p231, %p232
      %p234 = scmp.ne.s32.totalorder %s222, %s223
      %p235 = scmp.eq.s32.totalorder %s36, 7
      %p236 = por %p234, %p235
      %p238 = scmp.ne.s32.totalorder %s223, %s237
      %p239 = scmp.eq.s32.totalorder %s36, 0
      %p240 = por %p238, %p239
      %s241 = ssub.s32 %s30, %s37
      %p242 = scmp.eq.s32.totalorder %s241, 0
      %s244 = sadd.s32 %s243, 1
      %s245 = scalar_select %p242, %s243, %s244
      %p248 = pneg %p242
      %p249 = scmp.eq.s32.totalorder %s30, 7
      %p250 = por %p248, %p249
      %p251 = scmp.ne.s32.totalorder %s243, %s246
      %p252 = scmp.eq.s32.totalorder %s30, 0
      %p253 = por %p251, %p252
      %p254 = scmp.ne.s32.totalorder %s243, %s246
      %p255 = scmp.eq.s32.totalorder %s35, 7
      %p256 = por %p254, %p255
      %p257 = scmp.ne.s32.totalorder %s246, %s247
      %p258 = scmp.eq.s32.totalorder %s35, 0
      %p259 = por %p257, %p258
      %p260 = scmp.ne.s32.totalorder %s246, %s247
      %p261 = scmp.eq.s32.totalorder %s36, 7
      %p262 = por %p260, %p261
      %p264 = scmp.ne.s32.totalorder %s247, %s263
      %p265 = scmp.eq.s32.totalorder %s36, 0
      %p266 = por %p264, %p265
      %s267 = ssub.s32 %s30, %s37
      %p268 = scmp.eq.s32.totalorder %s267, 0
      %s270 = sadd.s32 %s269, 1
      %s271 = scalar_select %p268, %s269, %s270
      %p274 = pneg %p268
      %p275 = scmp.eq.s32.totalorder %s30, 7
      %p276 = por %p274, %p275
      %p277 = scmp.ne.s32.totalorder %s269, %s272
      %p278 = scmp.eq.s32.totalorder %s30, 0
      %p279 = por %p277, %p278
      %p280 = scmp.ne.s32.totalorder %s269, %s272
      %p281 = scmp.eq.s32.totalorder %s35, 7
      %p282 = por %p280, %p281
      %p283 = scmp.ne.s32.totalorder %s272, %s273
      %p284 = scmp.eq.s32.totalorder %s35, 0
      %p285 = por %p283, %p284
      %p286 = scmp.ne.s32.totalorder %s272, %s273
      %p287 = scmp.eq.s32.totalorder %s36, 7
      %p288 = por %p286, %p287
      %p290 = scmp.ne.s32.totalorder %s273, %s289
      %p291 = scmp.eq.s32.totalorder %s36, 0
      %p292 = por %p290, %p291
      %p293 = scmp.le.s32.totalorder 1, %s30
      %p294 = scmp.lt.s32.totalorder %s30, 9
      %p295 = pnand %p293, %p294
      %p296 = pneg %p295
      // Predicated region
      $region9: #{tpu_custom_call.1} parent=5 // pred_check
        _
      $region10: #{tpu_custom_call.1} parent=5 // pred_check_branch
        %298 = sbr.rel (%p295) target = $region12
      $region11: #{tpu_custom_call.1} parent=5 // pred_region
        %s299 = ssub.s32 %s30, 1
        // Predicated region
        $region13: #{tpu_custom_call.1} parent=11 // pred_check
          %p300 = pneg %p51
        $region14: #{tpu_custom_call.1} parent=11 // pred_check_branch
          %302 = sbr.rel (%p300) target = $region16
        $region15: #{tpu_custom_call.1} parent=11 // pred_region
          %s304 = ssub.s32 64, 64
          %305 = vsyncadd [#allocation6], %s304
          %s307 = sshll.u32 [#allocation5], 4
          %s308 = int_to_ptr.vmem [resolvable:$true] %s307
          %310 = dma.hbm_to_vmem [thread:$0]  %s1, 64, %s308, [#allocation6]
        $region16: #{tpu_custom_call.1} parent=11 // pred_fallthru
          _
        // Predicated region
        $region17: #{tpu_custom_call.1} parent=11 // pred_check
          %p311 = pneg %p128
        $region18: #{tpu_custom_call.1} parent=11 // pred_check_branch
          %313 = sbr.rel (%p311) target = $region20
        $region19: #{tpu_custom_call.1} parent=11 // pred_region
          %s315 = ssub.s32 512, 512
          %316 = vsyncadd [#allocation12], %s315
          %s317 = sshll.u32 [#allocation11], 4
          %s318 = int_to_ptr.vmem [resolvable:$true] %s317
          %323 = dma.hbm_to_vmem [thread:$0]  %s4, 512, %s318, [#allocation12], 128, 128, 8
        $region20: #{tpu_custom_call.1} parent=11 // pred_fallthru
          _
        // Predicated region
        $region21: #{tpu_custom_call.1} parent=11 // pred_check
          %p324 = pneg %p149
        $region22: #{tpu_custom_call.1} parent=11 // pred_check_branch
          %326 = sbr.rel (%p324) target = $region24
        $region23: #{tpu_custom_call.1} parent=11 // pred_region
          _
        $region24: #{tpu_custom_call.1} parent=11 // pred_fallthru
          _
        // Predicated region
        $region25: #{tpu_custom_call.1} parent=11 // pred_check
          %p327 = pneg %p170
        $region26: #{tpu_custom_call.1} parent=11 // pred_check_branch
          %329 = sbr.rel (%p327) target = $region28
        $region27: #{tpu_custom_call.1} parent=11 // pred_region
          %s331 = ssub.s32 2048, 2048
          %332 = vsyncadd [#allocation12], %s331
          %s333 = sshll.u32 [#allocation13], 4
          %s334 = int_to_ptr.vmem [resolvable:$true] %s333
          %339 = dma.hbm_to_vmem [thread:$0]  %s6, 2048, %s334, [#allocation12], 128, 128, 8
        $region28: #{tpu_custom_call.1} parent=11 // pred_fallthru
          _
        // Predicated region
        $region29: #{tpu_custom_call.1} parent=11 // pred_check
          %p340 = pneg %p191
        $region30: #{tpu_custom_call.1} parent=11 // pred_check_branch
          %342 = sbr.rel (%p340) target = $region32
        $region31: #{tpu_custom_call.1} parent=11 // pred_region
          _
        $region32: #{tpu_custom_call.1} parent=11 // pred_fallthru
          _
        // Predicated region
        $region33: #{tpu_custom_call.1} parent=11 // pred_check
          %p343 = pneg %p212
        $region34: #{tpu_custom_call.1} parent=11 // pred_check_branch
          %345 = sbr.rel (%p343) target = $region36
        $region35: #{tpu_custom_call.1} parent=11 // pred_region
          _
        $region36: #{tpu_custom_call.1} parent=11 // pred_fallthru
          _
        // Predicated region
        $region37: #{tpu_custom_call.1} parent=11 // pred_check
          %p346 = pneg %p233
        $region38: #{tpu_custom_call.1} parent=11 // pred_check_branch
          %348 = sbr.rel (%p346) target = $region40
        $region39: #{tpu_custom_call.1} parent=11 // pred_region
          _
        $region40: #{tpu_custom_call.1} parent=11 // pred_fallthru
          _
      $region12: #{tpu_custom_call.1} parent=5 // pred_fallthru
        _
      %p349 = scmp.lt.s32.totalorder %s30, 8
      // Predicated region
      $region41: #{tpu_custom_call.1} parent=5 // pred_check
        %p350 = pneg %p349
      $region42: #{tpu_custom_call.1} parent=5 // pred_check_branch
        %352 = sbr.rel (%p350) target = $region44
      $region43: #{tpu_custom_call.1} parent=5 // pred_region
        // Predicated region
        $region45: #{tpu_custom_call.1} parent=43 // pred_check
          %p353 = pneg %p73
        $region46: #{tpu_custom_call.1} parent=43 // pred_check_branch
          %355 = sbr.rel (%p353) target = $region48
        $region47: #{tpu_custom_call.1} parent=43 // pred_region
          %s356 = sand.u32 %s30, 1
          %s357 = scalar_lea.sflag [#allocation9], %s356
          %s358 = sand.u32 %s63, 1
          %s359 = smul.addr %s358, 4
          %s360 = scalar_lea.vmem [#allocation8], %s359
          %s361 = sld [smem:[#allocation4 + %s30]]
          %s363 = ssub.s32 64, 64
          %364 = vsyncadd %s357, %s363
          %s365 = smul.addr %s361, 64
          %s366 = scalar_lea.hbm %s2, %s365
          %s368 = sshll.u32 %s360, 4
          %s369 = int_to_ptr.vmem [resolvable:$true] %s368
          %371 = dma.hbm_to_vmem [thread:$0]  %s366, 64, %s369, %s357
        $region48: #{tpu_custom_call.1} parent=43 // pred_fallthru
          _
        // Predicated region
        $region49: #{tpu_custom_call.1} parent=43 // pred_check
          %p372 = pneg %p101
        $region50: #{tpu_custom_call.1} parent=43 // pred_check_branch
          %374 = sbr.rel (%p372) target = $region52
        $region51: #{tpu_custom_call.1} parent=43 // pred_region
          %s375 = sand.u32 %s30, 1
          %s376 = scalar_lea.sflag [#allocation9], %s375
          %s377 = sand.u32 %s91, 1
          %s378 = smul.addr %s377, 4
          %s379 = scalar_lea.vmem [#allocation10], %s378
          %s380 = sld [smem:[#allocation4 + %s30]]
          %s382 = ssub.s32 64, 64
          %383 = vsyncadd %s376, %s382
          %s384 = smul.addr %s380, 64
          %s385 = scalar_lea.hbm %s3, %s384
          %s387 = sshll.u32 %s379, 4
          %s388 = int_to_ptr.vmem [resolvable:$true] %s387
          %390 = dma.hbm_to_vmem [thread:$0]  %s385, 64, %s388, %s376
        $region52: #{tpu_custom_call.1} parent=43 // pred_fallthru
          _
      $region44: #{tpu_custom_call.1} parent=5 // pred_fallthru
        _
      %p391 = scmp.le.s32.totalorder 1, %s30
      %p392 = scmp.lt.s32.totalorder %s30, 9
      %p393 = pnand %p391, %p392
      %p394 = pneg %p393
      // Predicated region
      $region53: #{tpu_custom_call.1} parent=5 // pred_check
        _
      $region54: #{tpu_custom_call.1} parent=5 // pred_check_branch
        %396 = sbr.rel (%p393) target = $region56
      $region55: #{tpu_custom_call.1} parent=5 // pred_region
        %s397 = ssub.s32 %s30, 1
        // Predicated region
        $region57: #{tpu_custom_call.1} parent=55 // pred_check
          %p398 = pneg %p51
        $region58: #{tpu_custom_call.1} parent=55 // pred_check_branch
          %400 = sbr.rel (%p398) target = $region60
        $region59: #{tpu_custom_call.1} parent=55 // pred_region
          %401 = dma.done [#allocation6], 64
        $region60: #{tpu_custom_call.1} parent=55 // pred_fallthru
          _
        %s402 = sand.u32 %s35, 1
        %s403 = scalar_lea.sflag [#allocation9], %s402
        %s404 = sand.u32 %s66, 1
        %s405 = smul.addr %s404, 4
        %s406 = scalar_lea.vmem [#allocation8], %s405
        // Predicated region
        $region61: #{tpu_custom_call.1} parent=55 // pred_check
          %p407 = pneg %p79
        $region62: #{tpu_custom_call.1} parent=55 // pred_check_branch
          %409 = sbr.rel (%p407) target = $region64
        $region63: #{tpu_custom_call.1} parent=55 // pred_region
          %410 = dma.done %s403, 64
        $region64: #{tpu_custom_call.1} parent=55 // pred_fallthru
          _
        %s411 = sand.u32 %s35, 1
        %s412 = scalar_lea.sflag [#allocation9], %s411
        %s413 = sand.u32 %s94, 1
        %s414 = smul.addr %s413, 4
        %s415 = scalar_lea.vmem [#allocation10], %s414
        // Predicated region
        $region65: #{tpu_custom_call.1} parent=55 // pred_check
          %p416 = pneg %p107
        $region66: #{tpu_custom_call.1} parent=55 // pred_check_branch
          %418 = sbr.rel (%p416) target = $region68
        $region67: #{tpu_custom_call.1} parent=55 // pred_region
          %419 = dma.done %s412, 64
        $region68: #{tpu_custom_call.1} parent=55 // pred_fallthru
          _
        // Predicated region
        $region69: #{tpu_custom_call.1} parent=55 // pred_check
          %p420 = pneg %p128
        $region70: #{tpu_custom_call.1} parent=55 // pred_check_branch
          %422 = sbr.rel (%p420) target = $region72
        $region71: #{tpu_custom_call.1} parent=55 // pred_region
          %423 = dma.done [#allocation12], 512
        $region72: #{tpu_custom_call.1} parent=55 // pred_fallthru
          _
        // Predicated region
        $region73: #{tpu_custom_call.1} parent=55 // pred_check
          %p424 = pneg %p170
        $region74: #{tpu_custom_call.1} parent=55 // pred_check_branch
          %426 = sbr.rel (%p424) target = $region76
        $region75: #{tpu_custom_call.1} parent=55 // pred_region
          %427 = dma.done [#allocation12], 2048
        $region76: #{tpu_custom_call.1} parent=55 // pred_fallthru
          _
        %p428 = pneg %p51
        %p429 = pneg %p48
        %s430 = sand.u32 %s35, 1
        %s431 = scalar_lea.sflag [#allocation9], %s430
        %s432 = sand.u32 %s66, 1
        %s433 = smul.addr %s432, 4
        %s434 = scalar_lea.vmem [#allocation8], %s433
        %p435 = pneg %p79
        %p436 = pneg %p76
        %s437 = sand.u32 %s35, 1
        %s438 = scalar_lea.sflag [#allocation9], %s437
        %s439 = sand.u32 %s94, 1
        %s440 = smul.addr %s439, 4
        %s441 = scalar_lea.vmem [#allocation10], %s440
        %p442 = pneg %p107
        %p443 = pneg %p104
        %p444 = pneg %p128
        %p445 = pneg %p125
        %p446 = pneg %p149
        %p447 = pneg %p146
        %p448 = pneg %p170
        %p449 = pneg %p167
        %p450 = pneg %p191
        %p451 = pneg %p188
        %p452 = pneg %p212
        %p453 = pneg %p209
        %p454 = pneg %p233
        %p455 = pneg %p230
        %p456 = pneg %p259
        %p457 = pneg %p256
        %s458 = sand.u32 %s246, 1
        %s459 = scalar_lea.sflag [#allocation7], %s458
        %s460 = sand.u32 %s246, 1
        %s461 = smul.addr %s460, 4
        %s462 = scalar_lea.vmem [#allocation14], %s461
        %p463 = pneg %p285
        %p464 = pneg %p282
        %p465 = scmp.lt.s32.totalorder %s35, 7
        %s466 = scalar_select %p465, %s35, 7
        %s467 = smul.addr %s466, 4
        %s468 = scalar_lea.vmem %s11, %s467
        %s469 = sld [smem:[#allocation4 + %s35]]
        %s470 = sld [smem:[#allocation4 + %s35]]
        %p471 = scmp.lt.s32.totalorder %s35, 7
        %s472 = scalar_select %p471, %s35, 7
        %s473 = smul.addr %s472, 4
        %s474 = scalar_lea.vmem %s11, %s473
        %p475 = scmp.eq.s32.totalorder %s35, 0
        // Predicated region
        $region77: #{tpu_custom_call.1} parent=55 // pred_check
          %p476 = pneg %p475
        $region78: #{tpu_custom_call.1} parent=55 // pred_check_branch
          %478 = sbr.rel (%p476) target = $region80
        $region79: #{tpu_custom_call.1} parent=55 // pred_region
          %v479 = vld [vmem:[#allocation5] sm:$0xf]
          %v480 = vtanh.pop %v479
          %v481 = vld [vmem:[#allocation11] sm:$0xff]
          %v482 = vld [vmem:[#allocation11 + $0x8] sm:$0xff]
          %v483 = vld [vmem:[#allocation11 + $0x10] sm:$0xff]
          %v484 = vld [vmem:[#allocation11 + $0x18] sm:$0xff]
          %v485 = vld [vmem:[%s5] sm:$0x1]
          %v487 = vlaneseq
          %v488 = vshrl.u32 %v487, 7
          %v489 = vsub.s32 0, %v488
          %v490 = vrot.slane %v485, %v489
          %vm492 = vcmask 261120
          %v494 = vsel %vm492, %v480, 0
          %496 = vmatprep.subr.mxu0 0.0
          %497 = vmatpush1.msra.mxu0 %v481
          %498 = vmatprep.subr.mxu0 0.0
          %499 = vmatpush1.msra.mxu0 %v482
          %500 = vmatprep.subr.mxu0 0.0
          %501 = vmatpush1.msra.mxu0 %v483
          %502 = vmatprep.subr.mxu0 0.0
          %503 = vmatpush1.msra.mxu0 %v484
          %504 = vmatprep.subr.mxu0 0.0
          %505 = vmatpush1.msra.mxu0 0.0
          %506 = vmatprep.subr.mxu0 0.0
          %507 = vmatpush1.msra.mxu0 0.0
          %508 = vmatprep.subr.mxu0 0.0
          %509 = vmatpush1.msra.mxu0 0.0
          %510 = vmatprep.subr.mxu0 0.0
          %511 = vmatpush1.msra.mxu0 0.0
          %512 = vmatprep.subr.mxu0 0.0
          %513 = vmatpush1.msra.mxu0 0.0
          %514 = vmatprep.subr.mxu0 0.0
          %515 = vmatpush1.msra.mxu0 0.0
          %516 = vmatprep.subr.mxu0 0.0
          %517 = vmatpush1.msra.mxu0 0.0
          %518 = vmatprep.subr.mxu0 0.0
          %519 = vmatpush1.msra.mxu0 0.0
          %520 = vmatprep.subr.mxu0 0.0
          %521 = vmatpush1.msra.mxu0 0.0
          %522 = vmatprep.subr.mxu0 0.0
          %523 = vmatpush1.msra.mxu0 0.0
          %524 = vmatprep.subr.mxu0 0.0
          %525 = vmatpush1.msra.mxu0 0.0
          %526 = vmatprep.subr.mxu0 0.0
          %527 = vmatpush1.msra.mxu0 0.0
          %528 = vmatprep.subr.mxu0 0.0
          %529 = vmatpush1.msra.mxu0 0.0
          %530 = vmatprep.subr.mxu0 0.0
          %531 = vmatpush1.msra.mxu0 0.0
          %532 = vmatprep.subr.mxu0 0.0
          %533 = vmatpush1.msra.mxu0 0.0
          %534 = vmatprep.subr.mxu0 0.0
          %535 = vmatpush1.msra.mxu0 0.0
          %536 = vmatprep.subr.mxu0 0.0
          %537 = vmatpush1.msra.mxu0 0.0
          %538 = vmatprep.subr.mxu0 0.0
          %539 = vmatpush1.msra.mxu0 0.0
          %540 = vmatprep.subr.mxu0 0.0
          %541 = vmatpush1.msra.mxu0 0.0
          %542 = vmatprep.subr.mxu0 0.0
          %543 = vmatpush1.msra.mxu0 0.0
          %544 = vmatprep.subr.mxu0 0.0
          %545 = vmatpush1.msra.mxu0 0.0
          %546 = vmatprep.subr.mxu0 0.0
          %547 = vmatpush1.msra.mxu0 0.0
          %548 = vmatprep.subr.mxu0 0.0
          %549 = vmatpush1.msra.mxu0 0.0
          %550 = vmatprep.subr.mxu0 0.0
          %551 = vmatpush1.msra.mxu0 0.0
          %552 = vmatprep.subr.mxu0 0.0
          %553 = vmatpush1.msra.mxu0 0.0
          %554 = vmatprep.subr.mxu0 0.0
          %555 = vmatpush1.msra.mxu0 0.0
          %556 = vmatprep.subr.mxu0 0.0
          %557 = vmatpush1.msra.mxu0 0.0
          %558 = vmatprep.subr.mxu0 0.0
          %559 = vmatpush1.msra.mxu0 0.0
          %560 = vmatprep.mubr.f32.mxu0 0.0
          %561 = vmatmul.mubr.f32.gmra.mrb[0].mxu0 %v494
          %v562 = vpop.f32.mrb[0].mxu0
          %v563 = vadd.f32 %v490, %v562
          %v564 = vpop.f32.mrb[0].mxu0
          %565 = vdwg.mxu0
          %v566 = vtanh.pop %v563
          %v567 = vmul.f32 %v566, %v566
          %vm568 = vcmask 257024
          %v569 = vsel %vm568, %v567, 0.0
          %570 = vadd.xlane.f32.xlu0 %v569
          %v571 = vpop.xlane.xlu0 %570
          %vm572 = vcmask 1043456
          %v573 = vsel %vm572, %v571, 0.0
          %v574 = vrot.slane %v573, 4
          %v575 = vadd.f32 %v573, %v574
          %v576 = vrot.slane %v575, 2
          %v577 = vadd.f32 %v575, %v576
          %v578 = vrot.slane %v577, 1
          %v579 = vadd.f32 %v577, %v578
          %v580 = vrsqrt.pop %v579
          %v581 = vmul.f32 %v580, 0.25298223
          %v582 = vsel %vm568, %v566, 0.0
          %583 = vadd.xlane.f32.xlu0 %v582
          %v584 = vpop.xlane.xlu0 %583
          %v585 = vrcp.pop 32.0
          %v586 = vmul.f32 %v584, %v585
          %v587 = vsub.f32 %v566, %v586
          %v588 = vmul.f32 %v587, %v587
          %v589 = vsel %vm568, %v588, 0.0
          %590 = vadd.xlane.f32.xlu0 %v589
          %v591 = vpop.xlane.xlu0 %590
          %v592 = vrcp.pop 31.0
          %v593 = vmul.f32 %v591, %v592
          %v594 = vrsqrt.pop %v593
          %v595 = vmul.f32 %v593, %v594
          %vm596 = vcmp.eq.f32.partialorder %v593, inf
          %v597 = vsel %vm596, %v593, %v595
          %vm598 = vcmp.eq.f32.partialorder %v593, 0.0
          %v599 = vand.u32 %v593, 2147483648
          %v600 = vsel %vm598, %v599, %v597
          %v601 = vmul.f32 %v581, %v587
          %v602 = vadd.f32 %v600, 1e-06
          %v603 = vrcp.pop %v602
          %v604 = vmul.f32 %v601, %v603
          %605 = vst.msk [vmem:[#allocation2] sm:$0xf] %vm568, %v604
        $region80: #{tpu_custom_call.1} parent=55 // pred_fallthru
          _
        %v606 = vld [vmem:[#allocation2] sm:$0xf]
        %v607 = vld [vmem:[#allocation5] sm:$0xf]
        %v608 = vld [vmem:[%s406] sm:$0xf]
        %v609 = vld [vmem:[%s415] sm:$0xf]
        %v610 = vsub.f32 %v606, %v608
        %v611 = vmul.f32 %v606, %v608
        %vm612 = vcmask 257024
        %v613 = vsel %vm612, %v611, 0.0
        %614 = vadd.xlane.f32.xlu0 %v613
        %v615 = vpop.xlane.xlu0 %614
        %v616 = vmul.f32 %v606, %v606
        %v617 = vsel %vm612, %v616, 0.0
        %618 = vadd.xlane.f32.xlu0 %v617
        %v619 = vpop.xlane.xlu0 %618
        %v620 = vmul.f32 %v608, %v608
        %v621 = vsel %vm612, %v620, 0.0
        %622 = vadd.xlane.f32.xlu0 %v621
        %v623 = vpop.xlane.xlu0 %622
        %v624 = vmul.f32 %v619, %v623
        %v625 = vmax.f32 %v624, 1e-16
        %v626 = vrsqrt.pop %v625
        %v627 = vmul.f32 %v615, %v626
        %v628 = vmul.f32 %v606, %v607
        %v629 = vsel %vm612, %v628, 0.0
        %630 = vadd.xlane.f32.xlu0 %v629
        %v631 = vpop.xlane.xlu0 %630
        %v632 = vmul.f32 %v607, %v607
        %v633 = vsel %vm612, %v632, 0.0
        %634 = vadd.xlane.f32.xlu0 %v633
        %v635 = vpop.xlane.xlu0 %634
        %v636 = vmul.f32 %v619, %v635
        %v637 = vmax.f32 %v636, 1e-16
        %v638 = vrsqrt.pop %v637
        %v639 = vmul.f32 %v631, %v638
        %641 = vrot.lane.b32.xlu0 %v608, 64
        %v642 = vpop.permute.xlu0 %641
        %645 = vrot.lane.b32.xlu0 %v606, 96
        %v646 = vpop.permute.xlu0 %645
        %vm648 = vcmask 523264
        %v649 = vsel %vm648, %v609, %v642
        %vm650 = vcmask 785408
        %v651 = vsel %vm650, %v649, %v646
        %v652 = vld [vmem:[#allocation13] sm:$0xff]
        %v653 = vld [vmem:[#allocation13 + $0x8] sm:$0xff]
        %v654 = vld [vmem:[#allocation13 + $0x10] sm:$0xff]
        %v655 = vld [vmem:[#allocation13 + $0x18] sm:$0xff]
        %v656 = vld [vmem:[#allocation13 + $0x20] sm:$0xff]
        %v657 = vld [vmem:[#allocation13 + $0x28] sm:$0xff]
        %v658 = vld [vmem:[#allocation13 + $0x30] sm:$0xff]
        %v659 = vld [vmem:[#allocation13 + $0x38] sm:$0xff]
        %v660 = vld [vmem:[#allocation13 + $0x40] sm:$0xff]
        %v661 = vld [vmem:[#allocation13 + $0x48] sm:$0xff]
        %v662 = vld [vmem:[#allocation13 + $0x50] sm:$0xff]
        %v663 = vld [vmem:[#allocation13 + $0x58] sm:$0xff]
        %v664 = vld [vmem:[#allocation13 + $0x60] sm:$0xff]
        %v665 = vld [vmem:[#allocation13 + $0x68] sm:$0xff]
        %v666 = vld [vmem:[#allocation13 + $0x70] sm:$0xff]
        %v667 = vld [vmem:[#allocation13 + $0x78] sm:$0xff]
        %v668 = vld [vmem:[%s8] sm:$0x1]
        %v670 = vlaneseq
        %v671 = vshrl.u32 %v670, 7
        %v672 = vsub.s32 0, %v671
        %v673 = vrot.slane %v668, %v672
        %675 = vmatprep.subr.mxu0 0.0
        %676 = vmatpush1.msra.mxu0 %v652
        %677 = vmatprep.subr.mxu0 0.0
        %678 = vmatpush1.msra.mxu0 %v653
        %679 = vmatprep.subr.mxu0 0.0
        %680 = vmatpush1.msra.mxu0 %v654
        %681 = vmatprep.subr.mxu0 0.0
        %682 = vmatpush1.msra.mxu0 %v655
        %683 = vmatprep.subr.mxu0 0.0
        %684 = vmatpush1.msra.mxu0 %v656
        %685 = vmatprep.subr.mxu0 0.0
        %686 = vmatpush1.msra.mxu0 %v657
        %687 = vmatprep.subr.mxu0 0.0
        %688 = vmatpush1.msra.mxu0 %v658
        %689 = vmatprep.subr.mxu0 0.0
        %690 = vmatpush1.msra.mxu0 %v659
        %691 = vmatprep.subr.mxu0 0.0
        %692 = vmatpush1.msra.mxu0 %v660
        %693 = vmatprep.subr.mxu0 0.0
        %694 = vmatpush1.msra.mxu0 %v661
        %695 = vmatprep.subr.mxu0 0.0
        %696 = vmatpush1.msra.mxu0 %v662
        %697 = vmatprep.subr.mxu0 0.0
        %698 = vmatpush1.msra.mxu0 %v663
        %699 = vmatprep.subr.mxu0 0.0
        %700 = vmatpush1.msra.mxu0 %v664
        %701 = vmatprep.subr.mxu0 0.0
        %702 = vmatpush1.msra.mxu0 %v665
        %703 = vmatprep.subr.mxu0 0.0
        %704 = vmatpush1.msra.mxu0 %v666
        %705 = vmatprep.subr.mxu0 0.0
        %706 = vmatpush1.msra.mxu0 %v667
        %707 = vmatprep.subr.mxu0 0.0
        %708 = vmatpush1.msra.mxu0 0.0
        %709 = vmatprep.subr.mxu0 0.0
        %710 = vmatpush1.msra.mxu0 0.0
        %711 = vmatprep.subr.mxu0 0.0
        %712 = vmatpush1.msra.mxu0 0.0
        %713 = vmatprep.subr.mxu0 0.0
        %714 = vmatpush1.msra.mxu0 0.0
        %715 = vmatprep.subr.mxu0 0.0
        %716 = vmatpush1.msra.mxu0 0.0
        %717 = vmatprep.subr.mxu0 0.0
        %718 = vmatpush1.msra.mxu0 0.0
        %719 = vmatprep.subr.mxu0 0.0
        %720 = vmatpush1.msra.mxu0 0.0
        %721 = vmatprep.subr.mxu0 0.0
        %722 = vmatpush1.msra.mxu0 0.0
        %723 = vmatprep.subr.mxu0 0.0
        %724 = vmatpush1.msra.mxu0 0.0
        %725 = vmatprep.subr.mxu0 0.0
        %726 = vmatpush1.msra.mxu0 0.0
        %727 = vmatprep.subr.mxu0 0.0
        %728 = vmatpush1.msra.mxu0 0.0
        %729 = vmatprep.subr.mxu0 0.0
        %730 = vmatpush1.msra.mxu0 0.0
        %731 = vmatprep.subr.mxu0 0.0
        %732 = vmatpush1.msra.mxu0 0.0
        %733 = vmatprep.subr.mxu0 0.0
        %734 = vmatpush1.msra.mxu0 0.0
        %735 = vmatprep.subr.mxu0 0.0
        %736 = vmatpush1.msra.mxu0 0.0
        %737 = vmatprep.subr.mxu0 0.0
        %738 = vmatpush1.msra.mxu0 0.0
        %739 = vmatprep.mubr.f32.mxu0 0.0
        %740 = vmatmul.mubr.f32.gmra.mrb[0].mxu0 %v651
        %v741 = vpop.f32.mrb[0].mxu0
        %v742 = vadd.f32 %v673, %v741
        %v743 = vpop.f32.mrb[0].mxu0
        %744 = vdwg.mxu0
        %v745 = vld [vmem:[%s7] sm:$0x1]
        %v746 = vlaneseq
        %v747 = vshrl.u32 %v746, 7
        %v748 = vsub.s32 0, %v747
        %v749 = vrot.slane %v745, %v748
        %v750 = vmul.f32 %v627, %v749
        %v751 = vadd.f32 %v742, %v750
        %v752 = vld [vmem:[%s7 + $0x1] sm:$0x1]
        %v753 = vlaneseq
        %v754 = vshrl.u32 %v753, 7
        %v755 = vsub.s32 0, %v754
        %v756 = vrot.slane %v752, %v755
        %v757 = vmul.f32 %v639, %v756
        %v758 = vadd.f32 %v751, %v757
        %v759 = vxor.u32 %v758, 2147483648
        %v760 = vmul.f32 %v759, 1.442695
        %v761 = vpow.pop %v760
        %v762 = vadd.f32 %v761, 1.0
        %v763 = vrcp.pop %v762
        %v764 = vmul.f32 1.0, %v763
        %v765 = vmul.f32 %v764, %v606
        %v766 = vtanh.pop %v758
        %768 = vrot.lane.b32.xlu0 %v766, 64
        %v769 = vpop.permute.xlu0 %768
        %v771 = vmul.f32 %v764, %v769
        %773 = vrot.lane.b32.xlu0 %v771, 96
        %v774 = vpop.permute.xlu0 %773
        %v776 = vadd.f32 %v765, %v774
        %v777 = vxor.u32 %v776, 2147483648
        %v778 = vmul.f32 %v777, 1.442695
        %v779 = vpow.pop %v778
        %v780 = vadd.f32 %v779, 1.0
        %v781 = vrcp.pop %v780
        %v782 = vmul.f32 1.0, %v781
        %784 = vrot.lane.b32.xlu0 %v782, 64
        %v785 = vpop.permute.xlu0 %784
        %v787 = vmul.f32 %v764, %v785
        %v788 = vld [vmem:[%s9] sm:$0x1]
        %v789 = vlaneseq
        %v790 = vshrl.u32 %v789, 7
        %v791 = vsub.s32 0, %v790
        %v792 = vrot.slane %v788, %v791
        %794 = vrot.lane.b32.xlu0 %v792, 64
        %v795 = vpop.permute.xlu0 %794
        %v797 = vmul.f32 %v787, %v795
        %799 = vrot.lane.b32.xlu0 %v797, 64
        %v800 = vpop.permute.xlu0 %799
        %v802 = vsel %vm612, %v800, 0.0
        %803 = vadd.xlane.f32.xlu0 %v802
        %v804 = vpop.xlane.xlu0 %803
        %v805 = vld [vmem:[%s9 + $0x1] sm:$0x1]
        %v806 = vlaneseq
        %v807 = vshrl.u32 %v806, 7
        %v808 = vsub.s32 0, %v807
        %v809 = vrot.slane %v805, %v808
        %v810 = vadd.f32 %v804, %v809
        %v811 = vxor.u32 %v810, 2147483648
        %v812 = vmul.f32 %v811, 1.442695
        %v813 = vpow.pop %v812
        %v814 = vadd.f32 %v813, 1.0
        %v815 = vrcp.pop %v814
        %v816 = vmul.f32 1.0, %v815
        %818 = vset.pattern.permute.xlu0 0
        %819 = vperm.xlu0 %818, %v816
        %v820 = vpop.permute.xlu0 %819
        %v822 = vmul.f32 %v610, %v820
        %v823 = vsub.f32 %v606, %v822
        %824 = vst.msk [vmem:[%s462] sm:$0xf] %vm612, %v823
        %vm825 = vcmask 3072
        %826 = vst.msk [vmem:[%s474] sm:$0xf] %vm825, %v816
        %827 = vst.msk [vmem:[#allocation2] sm:$0xf] %vm612, %v823
        %s828 = sand.u32 %s246, 1
        %s829 = scalar_lea.sflag [#allocation7], %s828
        %s830 = sand.u32 %s246, 1
        %s831 = smul.addr %s830, 4
        %s832 = scalar_lea.vmem [#allocation14], %s831
        %p833 = scmp.lt.s32.totalorder %s35, 7
        %s834 = scalar_select %p833, %s35, 7
        %s835 = smul.addr %s834, 4
        %s836 = scalar_lea.vmem %s11, %s835
        // Predicated region
        $region81: #{tpu_custom_call.1} parent=55 // pred_check
          %p837 = pneg %p256
        $region82: #{tpu_custom_call.1} parent=55 // pred_check_branch
          %839 = sbr.rel (%p837) target = $region84
        $region83: #{tpu_custom_call.1} parent=55 // pred_region
          %s841 = ssub.s32 64, 64
          %842 = vsyncadd %s829, %s841
          %s843 = smul.addr %s35, 64
          %s844 = scalar_lea.hbm %s10, %s843
          %s846 = sshll.u32 %s832, 4
          %s847 = int_to_ptr.vmem [resolvable:$true] %s846
          %849 = dma.vmem_to_hbm [thread:$0]  %s847, 64, %s844, %s829
        $region84: #{tpu_custom_call.1} parent=55 // pred_fallthru
          _
        // Predicated region
        $region85: #{tpu_custom_call.1} parent=55 // pred_check
          %p850 = pneg %p282
        $region86: #{tpu_custom_call.1} parent=55 // pred_check_branch
          %852 = sbr.rel (%p850) target = $region88
        $region87: #{tpu_custom_call.1} parent=55 // pred_region
          _
        $region88: #{tpu_custom_call.1} parent=55 // pred_fallthru
          _
      $region56: #{tpu_custom_call.1} parent=5 // pred_fallthru
        _
      %p853 = scmp.le.s32.totalorder 2, %s30
      // Predicated region
      $region89: #{tpu_custom_call.1} parent=5 // pred_check
        %p854 = pneg %p853
      $region90: #{tpu_custom_call.1} parent=5 // pred_check_branch
        %856 = sbr.rel (%p854) target = $region92
      $region91: #{tpu_custom_call.1} parent=5 // pred_region
        %s857 = ssub.s32 %s30, 2
        // Predicated region
        $region93: #{tpu_custom_call.1} parent=91 // pred_check
          %p858 = pneg %p262
        $region94: #{tpu_custom_call.1} parent=91 // pred_check_branch
          %860 = sbr.rel (%p858) target = $region96
        $region95: #{tpu_custom_call.1} parent=91 // pred_region
          %s861 = sand.u32 %s247, 1
          %s862 = scalar_lea.sflag [#allocation7], %s861
          %s863 = sand.u32 %s247, 1
          %s864 = smul.addr %s863, 4
          %s865 = scalar_lea.vmem [#allocation14], %s864
          %866 = dma.done %s862, 64
        $region96: #{tpu_custom_call.1} parent=91 // pred_fallthru
          _
        // Predicated region
        $region97: #{tpu_custom_call.1} parent=91 // pred_check
          %p867 = pneg %p288
        $region98: #{tpu_custom_call.1} parent=91 // pred_check_branch
          %869 = sbr.rel (%p867) target = $region100
        $region99: #{tpu_custom_call.1} parent=91 // pred_region
          %p870 = scmp.lt.s32.totalorder %s36, 7
          %s871 = scalar_select %p870, %s36, 7
          %s872 = smul.addr %s871, 4
          %s873 = scalar_lea.vmem %s11, %s872
        $region100: #{tpu_custom_call.1} parent=91 // pred_fallthru
          _
      $region92: #{tpu_custom_call.1} parent=5 // pred_fallthru
        _
    $region6: #{tpu_custom_call.1} parent=1 // loop_footer
      %s34 = sadd.s32 1, %s30
    $region7: #{tpu_custom_call.1} parent=1 // loop_footer_branch
      %29 = sbr.rel target = $region3
    $region8: #{tpu_custom_call.1} parent=1 // loop_exit
      _
    %874 = vsyncpa [#allocation6], 1
    %s875 = scalar_lea.sflag [#allocation6], 1
    %876 = vsyncpa %s875, 1
    %877 = vsyncpa [#allocation9], 1
    %s878 = scalar_lea.sflag [#allocation9], 1
    %879 = vsyncpa %s878, 1
    %880 = vsyncpa [#allocation12], 1
    %881 = vsyncpa [#allocation7], 1
    %s882 = scalar_lea.sflag [#allocation7], 1
    %883 = vsyncpa %s882, 1

</llo_original>
